<compile_context>
chip_gen: v7x
topology: tpu7x:2x2x1
jax: 0.10.0
libtpu: 0.0.40
codegen_flags: <defaults>
</compile_context>

<pallas_src>
import functools

import jax
import jax.numpy as jnp
from jax import lax
from jax.experimental import pallas as pl
from jax.experimental.pallas import tpu as pltpu

LANE = 128            # padded feature / hidden / action width (lane-dense)
SUBLANE = 8           # batch padded to a sublane multiple
W_ROWS = LANE         # rows [0, 128) of each layer slice hold the weight matrix
B_ROW = LANE          # row 128 holds the bias; rows 129..135 are zero padding
LAYER_ROWS = LANE + SUBLANE   # 136 rows per layer in the packed slab
_NEG_BIG = -1e30      # plain Python float: folded into the kernel, NOT captured


def policy_kernel(x_ref, slab_ref, o_ref, *, num_layers, valid_rows):
    # Whole problem lives in one VMEM-resident invocation: 4 matmuls + relus +
    # the dim-0 softmax. x_ref: (B_pad, 128) f32, slab_ref: (L, 136, 128) f32.
    h = x_ref[...]
    for l in range(num_layers):                      # static, unrolled
        w = slab_ref[l, 0:W_ROWS, :]                 # (128, 128) zero-padded weight
        b = slab_ref[l, B_ROW:B_ROW + 1, :]          # (1, 128)   zero-padded bias
        h = jnp.dot(h, w, preferred_element_type=jnp.float32) + b
        if l < num_layers - 1:
            h = jnp.maximum(h, 0.0)

    # softmax over dim=0 (the batch axis), matching F.softmax(x, dim=0).
    # Padded batch rows must not contribute to the column-wise reduction.
    row = lax.broadcasted_iota(jnp.int32, h.shape, 0)
    logits = jnp.where(row < valid_rows, h, _NEG_BIG)
    m = jnp.max(logits, axis=0, keepdims=True)
    e = jnp.exp(logits - m)                          # padded rows underflow to 0
    denom = jnp.sum(e, axis=0, keepdims=True)
    o_ref[...] = (e * pl.reciprocal(denom, approx=False)).astype(o_ref.dtype)


def pack_params(params):
    """Pack all weights (stored [in, out]) and biases into one (L, 136, 128) slab."""
    num_layers = len(params)
    slab = jnp.zeros((num_layers, LAYER_ROWS, LANE), jnp.float32)
    for l, (w, b) in enumerate(params):
        fi, fo = w.shape
        assert fi <= LANE and fo <= LANE, "layer dims must fit one 128-lane tile"
        slab = slab.at[l, :fi, :fo].set(w.astype(jnp.float32))
        slab = slab.at[l, B_ROW, :fo].set(b.astype(jnp.float32))
    return slab


def policy_forward(x, params):
    B, state_size = x.shape
    num_actions = params[-1][0].shape[1]
    num_layers = len(params)
    b_pad = max(SUBLANE, ((B + SUBLANE - 1) // SUBLANE) * SUBLANE)

    # Lane/sublane-padded activation tile (zeros in padded rows/lanes).
    x_pad = jnp.zeros((b_pad, LANE), jnp.float32).at[:B, :state_size].set(
        x.astype(jnp.float32))
    slab = pack_params(params)

    kernel = functools.partial(
        policy_kernel, num_layers=num_layers, valid_rows=B)

    # No grid: single invocation, whole arrays resident in VMEM, no pipeline
    # prologue/epilogue overhead. Output is lane-dense (b_pad, 128).
    out_pad = pl.pallas_call(
        kernel,
        out_shape=jax.ShapeDtypeStruct((b_pad, LANE), jnp.float32),
    )(x_pad, slab)

    # Slice off lane/batch padding (padded lanes/rows hold don't-care values).
    return out_pad[:B, :num_actions]


def init_params(key, state_size, num_actions, hidden=16):
    # Deterministic synthetic init (uniform, fan-in scaled like PyTorch's
    # default Linear init). Weights stored [in, out].
    dims = [(state_size, hidden), (hidden, hidden), (hidden, hidden),
            (hidden, num_actions)]
    params = []
    for (fan_in, fan_out) in dims:
        key, kw, kb = jax.random.split(key, 3)
        bound = 1.0 / jnp.sqrt(float(fan_in))
        w = jax.random.uniform(kw, (fan_in, fan_out), jnp.float32,
                               minval=-bound, maxval=bound)
        b = jax.random.uniform(kb, (fan_out,), jnp.float32,
                               minval=-bound, maxval=bound)
        params.append((w, b))
    return params


def policy_ref(x, params):
    # Pure-JAX reference for a sanity check.
    h = x
    for i, (w, b) in enumerate(params):
        h = h @ w + b
        if i < len(params) - 1:
            h = jnp.maximum(h, 0.0)
    return jax.nn.softmax(h, axis=0)


if __name__ == "__main__":
    state_size = 8
    num_actions = 4
    batch = 2

    key = jax.random.PRNGKey(0)
    key, kx = jax.random.split(key)
    x = jax.random.normal(kx, (batch, state_size), jnp.float32)

    params = init_params(key, state_size, num_actions)

    out = policy_forward(x, params)
    out = jax.block_until_ready(out)

    ref = policy_ref(x, params)
    assert out.shape == (batch, num_actions)
    assert bool(jnp.allclose(out, ref, atol=1e-5, rtol=1e-5))

    print("KERNEL_OK")
</pallas_src>

<mosaic_0001>
module attributes {stable_mosaic.version = 11 : i64} {
  func.func @policy_kernel(%arg0: memref<8x128xf32, #tpu.memory_space<vmem>>, %arg1: memref<4x136x128xf32, #tpu.memory_space<vmem>>, %arg2: memref<8x128xf32, #tpu.memory_space<vmem>>) attributes {dimension_semantics = [], scalar_prefetch = 0 : i64, scratch_operands = 0 : i64, tpu.core_type = #tpu.core_type<tc>} {
    %c0 = arith.constant 0 : index
    %c0_0 = arith.constant 0 : index
    %0 = vector.load %arg0[%c0, %c0_0] : memref<8x128xf32, #tpu.memory_space<vmem>>, vector<8x128xf32>
    %c0_1 = arith.constant 0 : index
    %c0_2 = arith.constant 0 : index
    %c0_3 = arith.constant 0 : index
    %1 = vector.load %arg1[%c0_1, %c0_2, %c0_3] : memref<4x136x128xf32, #tpu.memory_space<vmem>>, vector<1x128x128xf32>
    %2 = vector.shape_cast %1 : vector<1x128x128xf32> to vector<128x128xf32>
    %c0_4 = arith.constant 0 : index
    %c128 = arith.constant 128 : index
    %c0_5 = arith.constant 0 : index
    %3 = vector.load %arg1[%c0_4, %c128, %c0_5] : memref<4x136x128xf32, #tpu.memory_space<vmem>>, vector<1x1x128xf32>
    %4 = vector.shape_cast %3 : vector<1x1x128xf32> to vector<1x128xf32>
    %cst = arith.constant dense<0.000000e+00> : vector<8x128xf32>
    %5 = tpu.matmul %0, %2, %cst {dimension_numbers = #tpu.dot_dimension_numbers<[1], [0], [0], [1], [0, 0, 1, 1], [], []>} : vector<8x128xf32>, vector<128x128xf32>, vector<8x128xf32> -> vector<8x128xf32>
    %6 = vector.broadcast %4 : vector<1x128xf32> to vector<8x128xf32>
    %7 = arith.addf %5, %6 : vector<8x128xf32>
    %cst_6 = arith.constant 0.000000e+00 : f32
    %8 = vector.broadcast %cst_6 : f32 to vector<8x128xf32>
    %9 = arith.maximumf %7, %8 : vector<8x128xf32>
    %c1 = arith.constant 1 : index
    %c0_7 = arith.constant 0 : index
    %c0_8 = arith.constant 0 : index
    %10 = vector.load %arg1[%c1, %c0_7, %c0_8] : memref<4x136x128xf32, #tpu.memory_space<vmem>>, vector<1x128x128xf32>
    %11 = vector.shape_cast %10 : vector<1x128x128xf32> to vector<128x128xf32>
    %c1_9 = arith.constant 1 : index
    %c128_10 = arith.constant 128 : index
    %c0_11 = arith.constant 0 : index
    %12 = vector.load %arg1[%c1_9, %c128_10, %c0_11] : memref<4x136x128xf32, #tpu.memory_space<vmem>>, vector<1x1x128xf32>
    %13 = vector.shape_cast %12 : vector<1x1x128xf32> to vector<1x128xf32>
    %cst_12 = arith.constant dense<0.000000e+00> : vector<8x128xf32>
    %14 = tpu.matmul %9, %11, %cst_12 {dimension_numbers = #tpu.dot_dimension_numbers<[1], [0], [0], [1], [0, 0, 1, 1], [], []>} : vector<8x128xf32>, vector<128x128xf32>, vector<8x128xf32> -> vector<8x128xf32>
    %15 = vector.broadcast %13 : vector<1x128xf32> to vector<8x128xf32>
    %16 = arith.addf %14, %15 : vector<8x128xf32>
    %cst_13 = arith.constant 0.000000e+00 : f32
    %17 = vector.broadcast %cst_13 : f32 to vector<8x128xf32>
    %18 = arith.maximumf %16, %17 : vector<8x128xf32>
    %c2 = arith.constant 2 : index
    %c0_14 = arith.constant 0 : index
    %c0_15 = arith.constant 0 : index
    %19 = vector.load %arg1[%c2, %c0_14, %c0_15] : memref<4x136x128xf32, #tpu.memory_space<vmem>>, vector<1x128x128xf32>
    %20 = vector.shape_cast %19 : vector<1x128x128xf32> to vector<128x128xf32>
    %c2_16 = arith.constant 2 : index
    %c128_17 = arith.constant 128 : index
    %c0_18 = arith.constant 0 : index
    %21 = vector.load %arg1[%c2_16, %c128_17, %c0_18] : memref<4x136x128xf32, #tpu.memory_space<vmem>>, vector<1x1x128xf32>
    %22 = vector.shape_cast %21 : vector<1x1x128xf32> to vector<1x128xf32>
    %cst_19 = arith.constant dense<0.000000e+00> : vector<8x128xf32>
    %23 = tpu.matmul %18, %20, %cst_19 {dimension_numbers = #tpu.dot_dimension_numbers<[1], [0], [0], [1], [0, 0, 1, 1], [], []>} : vector<8x128xf32>, vector<128x128xf32>, vector<8x128xf32> -> vector<8x128xf32>
    %24 = vector.broadcast %22 : vector<1x128xf32> to vector<8x128xf32>
    %25 = arith.addf %23, %24 : vector<8x128xf32>
    %cst_20 = arith.constant 0.000000e+00 : f32
    %26 = vector.broadcast %cst_20 : f32 to vector<8x128xf32>
    %27 = arith.maximumf %25, %26 : vector<8x128xf32>
    %c3 = arith.constant 3 : index
    %c0_21 = arith.constant 0 : index
    %c0_22 = arith.constant 0 : index
    %28 = vector.load %arg1[%c3, %c0_21, %c0_22] : memref<4x136x128xf32, #tpu.memory_space<vmem>>, vector<1x128x128xf32>
    %29 = vector.shape_cast %28 : vector<1x128x128xf32> to vector<128x128xf32>
    %c3_23 = arith.constant 3 : index
    %c128_24 = arith.constant 128 : index
    %c0_25 = arith.constant 0 : index
    %30 = vector.load %arg1[%c3_23, %c128_24, %c0_25] : memref<4x136x128xf32, #tpu.memory_space<vmem>>, vector<1x1x128xf32>
    %31 = vector.shape_cast %30 : vector<1x1x128xf32> to vector<1x128xf32>
    %cst_26 = arith.constant dense<0.000000e+00> : vector<8x128xf32>
    %32 = tpu.matmul %27, %29, %cst_26 {dimension_numbers = #tpu.dot_dimension_numbers<[1], [0], [0], [1], [0, 0, 1, 1], [], []>} : vector<8x128xf32>, vector<128x128xf32>, vector<8x128xf32> -> vector<8x128xf32>
    %33 = vector.broadcast %31 : vector<1x128xf32> to vector<8x128xf32>
    %34 = arith.addf %32, %33 : vector<8x128xf32>
    %35 = tpu.iota {dimensions = array<i32: 0>} : vector<8x128xi32>
    %c2_i32 = arith.constant 2 : i32
    %36 = vector.broadcast %c2_i32 : i32 to vector<8x128xi32>
    %37 = arith.cmpi slt, %35, %36 : vector<8x128xi32>
    %cst_27 = arith.constant -1.000000e+30 : f32
    %38 = vector.broadcast %cst_27 : f32 to vector<8x128xf32>
    %39 = arith.select %37, %34, %38 : vector<8x128xi1>, vector<8x128xf32>
    %cst_28 = arith.constant dense<0xFF800000> : vector<128xf32>
    %40 = vector.multi_reduction <maximumf>, %39, %cst_28 [0] : vector<8x128xf32> to vector<128xf32>
    %41 = vector.shape_cast %40 : vector<128xf32> to vector<1x128xf32>
    %42 = vector.broadcast %41 : vector<1x128xf32> to vector<8x128xf32>
    %43 = arith.subf %39, %42 : vector<8x128xf32>
    %44 = math.exp %43 : vector<8x128xf32>
    %cst_29 = arith.constant dense<0.000000e+00> : vector<128xf32>
    %45 = vector.multi_reduction <add>, %44, %cst_29 [0] : vector<8x128xf32> to vector<128xf32>
    %46 = vector.shape_cast %45 : vector<128xf32> to vector<1x128xf32>
    %47 = tpu.reciprocal %46 : vector<1x128xf32> -> vector<1x128xf32>
    %48 = vector.broadcast %47 : vector<1x128xf32> to vector<8x128xf32>
    %49 = arith.mulf %44, %48 : vector<8x128xf32>
    %c0_30 = arith.constant 0 : index
    %c0_31 = arith.constant 0 : index
    %50 = vector.load %arg2[%c0_30, %c0_31] : memref<8x128xf32, #tpu.memory_space<vmem>>, vector<8x128xf32>
    tpu.vector_store %arg2[%c0_30, %c0_31], %49 {strides = array<i32>} : memref<8x128xf32, #tpu.memory_space<vmem>>, vector<8x128xf32>,
    return
  }
}

</mosaic_0001>

<llo_original>
// kernel: tpu_custom_call.1
$region0: #{tpu_custom_call.1}
  #allocation0 [shape = 'u32[]', space=smem, size = 0x4, offset = 0x4, fixed_abs, tag = 'smem constant byte address 0x4 - core index']
  #allocation1 [shape = 'u32[144,128]{1,0:T(1,128)}', space=vmem, size = 0x12000, scoped, tag = 'internal scratch']
  %s0 = inlined_call_operand.hbm [shape: f32[8,128], index: 0, kind: input, shape index: {}]
  %s1 = inlined_call_operand.hbm [shape: f32[4,136,128], index: 1, kind: input, shape index: {}]
  %s2 = inlined_call_operand.hbm [shape: f32[8,128], index: 2, kind: output, shape index: {}]
  %s3 = sld [smem:[#allocation0]]
  $region26: #{tpu_custom_call.1} parent=0
    _
  %s5 = ssub.s32 1, %s3
  %s6 = scalar_select 0, %s5, %s3
  $region1: #{tpu_custom_call.1} parent=0
    #allocation2 [shape = 'u8[4096]{0}', space=vmem, size = 0x1000, scoped, tag = 'input window, operand 0, single buffered']
    #allocation3 [shape = 's32[1]{0}', space=sflag, size = 0x4, scoped, tag = 'scoped memory for tpu_custom_call.1']
    #allocation4 [shape = 's32[1]{0}', space=sflag, size = 0x4, scoped, tag = 'scoped memory for tpu_custom_call.1']
    #allocation5 [shape = 'u8[278528]{0}', space=vmem, size = 0x44000, scoped, tag = 'input window, operand 1, single buffered']
    #allocation6 [shape = 's32[1]{0}', space=sflag, size = 0x4, scoped, tag = 'scoped memory for tpu_custom_call.1']
    #allocation7 [shape = 'u8[4096]{0}', space=vmem, size = 0x1000, scoped, tag = 'output window, operand 0, single buffered']
    %7 = vsyncpa [#allocation3], 0
    %8 = vsyncpa [#allocation6], 0
    %9 = vsyncpa [#allocation4], 0
    // Predicated region
    $region2: #{tpu_custom_call.1} parent=1 // pred_check
      _
    $region3: #{tpu_custom_call.1} parent=1 // pred_check_branch
      %11 = sbr.rel (0) target = $region5
    $region4: #{tpu_custom_call.1} parent=1 // pred_region
      %s13 = ssub.s32 128, 128
      %14 = vsyncadd [#allocation3], %s13
      %s16 = sshll.u32 [#allocation2], 4
      %s17 = int_to_ptr.vmem [resolvable:$true] %s16
      %19 = dma.hbm_to_vmem [thread:$0]  %s0, 128, %s17, [#allocation3]
    $region5: #{tpu_custom_call.1} parent=1 // pred_fallthru
      _
    // Predicated region
    $region6: #{tpu_custom_call.1} parent=1 // pred_check
      _
    $region7: #{tpu_custom_call.1} parent=1 // pred_check_branch
      %21 = sbr.rel (0) target = $region9
    $region8: #{tpu_custom_call.1} parent=1 // pred_region
      %s23 = ssub.s32 8704, 8704
      %24 = vsyncadd [#allocation6], %s23
      %s25 = sshll.u32 [#allocation5], 4
      %s26 = int_to_ptr.vmem [resolvable:$true] %s25
      %31 = dma.hbm_to_vmem [thread:$0]  %s1, 8704, %s26, [#allocation6], 128, 128, 8
    $region9: #{tpu_custom_call.1} parent=1 // pred_fallthru
      _
    // Predicated region
    $region10: #{tpu_custom_call.1} parent=1 // pred_check
      _
    $region11: #{tpu_custom_call.1} parent=1 // pred_check_branch
      %33 = sbr.rel (0) target = $region13
    $region12: #{tpu_custom_call.1} parent=1 // pred_region
      %34 = dma.done [#allocation3], 128
    $region13: #{tpu_custom_call.1} parent=1 // pred_fallthru
      _
    // Predicated region
    $region14: #{tpu_custom_call.1} parent=1 // pred_check
      _
    $region15: #{tpu_custom_call.1} parent=1 // pred_check_branch
      %36 = sbr.rel (0) target = $region17
    $region16: #{tpu_custom_call.1} parent=1 // pred_region
      %37 = dma.done [#allocation6], 8704
    $region17: #{tpu_custom_call.1} parent=1 // pred_fallthru
      _
    %v38 = vld [vmem:[#allocation2] sm:$0xff]
    %v39 = vld [vmem:[#allocation5] sm:$0xff]
    %v40 = vld [vmem:[#allocation5 + $0x8] sm:$0xff]
    %v41 = vld [vmem:[#allocation5 + $0x10] sm:$0xff]
    %v42 = vld [vmem:[#allocation5 + $0x18] sm:$0xff]
    %v43 = vld [vmem:[#allocation5 + $0x20] sm:$0xff]
    %v44 = vld [vmem:[#allocation5 + $0x28] sm:$0xff]
    %v45 = vld [vmem:[#allocation5 + $0x30] sm:$0xff]
    %v46 = vld [vmem:[#allocation5 + $0x38] sm:$0xff]
    %v47 = vld [vmem:[#allocation5 + $0x40] sm:$0xff]
    %v48 = vld [vmem:[#allocation5 + $0x48] sm:$0xff]
    %v49 = vld [vmem:[#allocation5 + $0x50] sm:$0xff]
    %v50 = vld [vmem:[#allocation5 + $0x58] sm:$0xff]
    %v51 = vld [vmem:[#allocation5 + $0x60] sm:$0xff]
    %v52 = vld [vmem:[#allocation5 + $0x68] sm:$0xff]
    %v53 = vld [vmem:[#allocation5 + $0x70] sm:$0xff]
    %v54 = vld [vmem:[#allocation5 + $0x78] sm:$0xff]
    %v55 = vld [vmem:[#allocation5 + $0x80] sm:$0x1]
    %v56 = vlaneseq
    %v57 = vshrl.u32 %v56, 7
    %v58 = vsub.s32 0, %v57
    %v59 = vrot.slane %v55, %v58
    %60 = vmatprep.subr.mxu0 0.0
    %61 = vmatpush1.msra.mxu0 %v39
    %62 = vmatprep.subr.mxu0 0.0
    %63 = vmatpush1.msra.mxu0 %v40
    %64 = vmatprep.subr.mxu0 0.0
    %65 = vmatpush1.msra.mxu0 %v41
    %66 = vmatprep.subr.mxu0 0.0
    %67 = vmatpush1.msra.mxu0 %v42
    %68 = vmatprep.subr.mxu0 0.0
    %69 = vmatpush1.msra.mxu0 %v43
    %70 = vmatprep.subr.mxu0 0.0
    %71 = vmatpush1.msra.mxu0 %v44
    %72 = vmatprep.subr.mxu0 0.0
    %73 = vmatpush1.msra.mxu0 %v45
    %74 = vmatprep.subr.mxu0 0.0
    %75 = vmatpush1.msra.mxu0 %v46
    %76 = vmatprep.subr.mxu0 0.0
    %77 = vmatpush1.msra.mxu0 %v47
    %78 = vmatprep.subr.mxu0 0.0
    %79 = vmatpush1.msra.mxu0 %v48
    %80 = vmatprep.subr.mxu0 0.0
    %81 = vmatpush1.msra.mxu0 %v49
    %82 = vmatprep.subr.mxu0 0.0
    %83 = vmatpush1.msra.mxu0 %v50
    %84 = vmatprep.subr.mxu0 0.0
    %85 = vmatpush1.msra.mxu0 %v51
    %86 = vmatprep.subr.mxu0 0.0
    %87 = vmatpush1.msra.mxu0 %v52
    %88 = vmatprep.subr.mxu0 0.0
    %89 = vmatpush1.msra.mxu0 %v53
    %90 = vmatprep.subr.mxu0 0.0
    %91 = vmatpush1.msra.mxu0 %v54
    %92 = vmatprep.subr.mxu0 0.0
    %93 = vmatpush1.msra.mxu0 0.0
    %94 = vmatprep.subr.mxu0 0.0
    %95 = vmatpush1.msra.mxu0 0.0
    %96 = vmatprep.subr.mxu0 0.0
    %97 = vmatpush1.msra.mxu0 0.0
    %98 = vmatprep.subr.mxu0 0.0
    %99 = vmatpush1.msra.mxu0 0.0
    %100 = vmatprep.subr.mxu0 0.0
    %101 = vmatpush1.msra.mxu0 0.0
    %102 = vmatprep.subr.mxu0 0.0
    %103 = vmatpush1.msra.mxu0 0.0
    %104 = vmatprep.subr.mxu0 0.0
    %105 = vmatpush1.msra.mxu0 0.0
    %106 = vmatprep.subr.mxu0 0.0
    %107 = vmatpush1.msra.mxu0 0.0
    %108 = vmatprep.subr.mxu0 0.0
    %109 = vmatpush1.msra.mxu0 0.0
    %110 = vmatprep.subr.mxu0 0.0
    %111 = vmatpush1.msra.mxu0 0.0
    %112 = vmatprep.subr.mxu0 0.0
    %113 = vmatpush1.msra.mxu0 0.0
    %114 = vmatprep.subr.mxu0 0.0
    %115 = vmatpush1.msra.mxu0 0.0
    %116 = vmatprep.subr.mxu0 0.0
    %117 = vmatpush1.msra.mxu0 0.0
    %118 = vmatprep.subr.mxu0 0.0
    %119 = vmatpush1.msra.mxu0 0.0
    %120 = vmatprep.subr.mxu0 0.0
    %121 = vmatpush1.msra.mxu0 0.0
    %122 = vmatprep.subr.mxu0 0.0
    %123 = vmatpush1.msra.mxu0 0.0
    %124 = vmatprep.mubr.f32.mxu0 0.0
    %125 = vmatmul.mubr.f32.gmra.mrb[0].mxu0 %v38
    %v126 = vpop.f32.mrb[0].mxu0
    %v127 = vadd.f32 %v59, %v126
    %v128 = vpop.f32.mrb[0].mxu0
    %129 = vdwg.mxu0
    %v130 = vmax.f32 %v127, 0.0
    %s131 = scalar_lea.vmem [#allocation5], 136
    %v132 = vld [vmem:[%s131] sm:$0xff]
    %v133 = vld [vmem:[%s131 + $0x8] sm:$0xff]
    %v134 = vld [vmem:[%s131 + $0x10] sm:$0xff]
    %v135 = vld [vmem:[%s131 + $0x18] sm:$0xff]
    %v136 = vld [vmem:[%s131 + $0x20] sm:$0xff]
    %v137 = vld [vmem:[%s131 + $0x28] sm:$0xff]
    %v138 = vld [vmem:[%s131 + $0x30] sm:$0xff]
    %v139 = vld [vmem:[%s131 + $0x38] sm:$0xff]
    %v140 = vld [vmem:[%s131 + $0x40] sm:$0xff]
    %v141 = vld [vmem:[%s131 + $0x48] sm:$0xff]
    %v142 = vld [vmem:[%s131 + $0x50] sm:$0xff]
    %v143 = vld [vmem:[%s131 + $0x58] sm:$0xff]
    %v144 = vld [vmem:[%s131 + $0x60] sm:$0xff]
    %v145 = vld [vmem:[%s131 + $0x68] sm:$0xff]
    %v146 = vld [vmem:[%s131 + $0x70] sm:$0xff]
    %v147 = vld [vmem:[%s131 + $0x78] sm:$0xff]
    %v148 = vld [vmem:[%s131 + $0x80] sm:$0x1]
    %v149 = vlaneseq
    %v150 = vshrl.u32 %v149, 7
    %v151 = vsub.s32 0, %v150
    %v152 = vrot.slane %v148, %v151
    %153 = vmatprep.subr.mxu0 0.0
    %154 = vmatpush1.msra.mxu0 %v132
    %155 = vmatprep.subr.mxu0 0.0
    %156 = vmatpush1.msra.mxu0 %v133
    %157 = vmatprep.subr.mxu0 0.0
    %158 = vmatpush1.msra.mxu0 %v134
    %159 = vmatprep.subr.mxu0 0.0
    %160 = vmatpush1.msra.mxu0 %v135
    %161 = vmatprep.subr.mxu0 0.0
    %162 = vmatpush1.msra.mxu0 %v136
    %163 = vmatprep.subr.mxu0 0.0
    %164 = vmatpush1.msra.mxu0 %v137
    %165 = vmatprep.subr.mxu0 0.0
    %166 = vmatpush1.msra.mxu0 %v138
    %167 = vmatprep.subr.mxu0 0.0
    %168 = vmatpush1.msra.mxu0 %v139
    %169 = vmatprep.subr.mxu0 0.0
    %170 = vmatpush1.msra.mxu0 %v140
    %171 = vmatprep.subr.mxu0 0.0
    %172 = vmatpush1.msra.mxu0 %v141
    %173 = vmatprep.subr.mxu0 0.0
    %174 = vmatpush1.msra.mxu0 %v142
    %175 = vmatprep.subr.mxu0 0.0
    %176 = vmatpush1.msra.mxu0 %v143
    %177 = vmatprep.subr.mxu0 0.0
    %178 = vmatpush1.msra.mxu0 %v144
    %179 = vmatprep.subr.mxu0 0.0
    %180 = vmatpush1.msra.mxu0 %v145
    %181 = vmatprep.subr.mxu0 0.0
    %182 = vmatpush1.msra.mxu0 %v146
    %183 = vmatprep.subr.mxu0 0.0
    %184 = vmatpush1.msra.mxu0 %v147
    %185 = vmatprep.subr.mxu0 0.0
    %186 = vmatpush1.msra.mxu0 0.0
    %187 = vmatprep.subr.mxu0 0.0
    %188 = vmatpush1.msra.mxu0 0.0
    %189 = vmatprep.subr.mxu0 0.0
    %190 = vmatpush1.msra.mxu0 0.0
    %191 = vmatprep.subr.mxu0 0.0
    %192 = vmatpush1.msra.mxu0 0.0
    %193 = vmatprep.subr.mxu0 0.0
    %194 = vmatpush1.msra.mxu0 0.0
    %195 = vmatprep.subr.mxu0 0.0
    %196 = vmatpush1.msra.mxu0 0.0
    %197 = vmatprep.subr.mxu0 0.0
    %198 = vmatpush1.msra.mxu0 0.0
    %199 = vmatprep.subr.mxu0 0.0
    %200 = vmatpush1.msra.mxu0 0.0
    %201 = vmatprep.subr.mxu0 0.0
    %202 = vmatpush1.msra.mxu0 0.0
    %203 = vmatprep.subr.mxu0 0.0
    %204 = vmatpush1.msra.mxu0 0.0
    %205 = vmatprep.subr.mxu0 0.0
    %206 = vmatpush1.msra.mxu0 0.0
    %207 = vmatprep.subr.mxu0 0.0
    %208 = vmatpush1.msra.mxu0 0.0
    %209 = vmatprep.subr.mxu0 0.0
    %210 = vmatpush1.msra.mxu0 0.0
    %211 = vmatprep.subr.mxu0 0.0
    %212 = vmatpush1.msra.mxu0 0.0
    %213 = vmatprep.subr.mxu0 0.0
    %214 = vmatpush1.msra.mxu0 0.0
    %215 = vmatprep.subr.mxu0 0.0
    %216 = vmatpush1.msra.mxu0 0.0
    %217 = vmatprep.mubr.f32.mxu0 0.0
    %218 = vmatmul.mubr.f32.gmra.mrb[0].mxu0 %v130
    %v219 = vpop.f32.mrb[0].mxu0
    %v220 = vadd.f32 %v152, %v219
    %v221 = vpop.f32.mrb[0].mxu0
    %222 = vdwg.mxu0
    %v223 = vmax.f32 %v220, 0.0
    %s224 = scalar_lea.vmem [#allocation5], 272
    %v225 = vld [vmem:[%s224] sm:$0xff]
    %v226 = vld [vmem:[%s224 + $0x8] sm:$0xff]
    %v227 = vld [vmem:[%s224 + $0x10] sm:$0xff]
    %v228 = vld [vmem:[%s224 + $0x18] sm:$0xff]
    %v229 = vld [vmem:[%s224 + $0x20] sm:$0xff]
    %v230 = vld [vmem:[%s224 + $0x28] sm:$0xff]
    %v231 = vld [vmem:[%s224 + $0x30] sm:$0xff]
    %v232 = vld [vmem:[%s224 + $0x38] sm:$0xff]
    %v233 = vld [vmem:[%s224 + $0x40] sm:$0xff]
    %v234 = vld [vmem:[%s224 + $0x48] sm:$0xff]
    %v235 = vld [vmem:[%s224 + $0x50] sm:$0xff]
    %v236 = vld [vmem:[%s224 + $0x58] sm:$0xff]
    %v237 = vld [vmem:[%s224 + $0x60] sm:$0xff]
    %v238 = vld [vmem:[%s224 + $0x68] sm:$0xff]
    %v239 = vld [vmem:[%s224 + $0x70] sm:$0xff]
    %v240 = vld [vmem:[%s224 + $0x78] sm:$0xff]
    %v241 = vld [vmem:[%s224 + $0x80] sm:$0x1]
    %v242 = vlaneseq
    %v243 = vshrl.u32 %v242, 7
    %v244 = vsub.s32 0, %v243
    %v245 = vrot.slane %v241, %v244
    %246 = vmatprep.subr.mxu0 0.0
    %247 = vmatpush1.msra.mxu0 %v225
    %248 = vmatprep.subr.mxu0 0.0
    %249 = vmatpush1.msra.mxu0 %v226
    %250 = vmatprep.subr.mxu0 0.0
    %251 = vmatpush1.msra.mxu0 %v227
    %252 = vmatprep.subr.mxu0 0.0
    %253 = vmatpush1.msra.mxu0 %v228
    %254 = vmatprep.subr.mxu0 0.0
    %255 = vmatpush1.msra.mxu0 %v229
    %256 = vmatprep.subr.mxu0 0.0
    %257 = vmatpush1.msra.mxu0 %v230
    %258 = vmatprep.subr.mxu0 0.0
    %259 = vmatpush1.msra.mxu0 %v231
    %260 = vmatprep.subr.mxu0 0.0
    %261 = vmatpush1.msra.mxu0 %v232
    %262 = vmatprep.subr.mxu0 0.0
    %263 = vmatpush1.msra.mxu0 %v233
    %264 = vmatprep.subr.mxu0 0.0
    %265 = vmatpush1.msra.mxu0 %v234
    %266 = vmatprep.subr.mxu0 0.0
    %267 = vmatpush1.msra.mxu0 %v235
    %268 = vmatprep.subr.mxu0 0.0
    %269 = vmatpush1.msra.mxu0 %v236
    %270 = vmatprep.subr.mxu0 0.0
    %271 = vmatpush1.msra.mxu0 %v237
    %272 = vmatprep.subr.mxu0 0.0
    %273 = vmatpush1.msra.mxu0 %v238
    %274 = vmatprep.subr.mxu0 0.0
    %275 = vmatpush1.msra.mxu0 %v239
    %276 = vmatprep.subr.mxu0 0.0
    %277 = vmatpush1.msra.mxu0 %v240
    %278 = vmatprep.subr.mxu0 0.0
    %279 = vmatpush1.msra.mxu0 0.0
    %280 = vmatprep.subr.mxu0 0.0
    %281 = vmatpush1.msra.mxu0 0.0
    %282 = vmatprep.subr.mxu0 0.0
    %283 = vmatpush1.msra.mxu0 0.0
    %284 = vmatprep.subr.mxu0 0.0
    %285 = vmatpush1.msra.mxu0 0.0
    %286 = vmatprep.subr.mxu0 0.0
    %287 = vmatpush1.msra.mxu0 0.0
    %288 = vmatprep.subr.mxu0 0.0
    %289 = vmatpush1.msra.mxu0 0.0
    %290 = vmatprep.subr.mxu0 0.0
    %291 = vmatpush1.msra.mxu0 0.0
    %292 = vmatprep.subr.mxu0 0.0
    %293 = vmatpush1.msra.mxu0 0.0
    %294 = vmatprep.subr.mxu0 0.0
    %295 = vmatpush1.msra.mxu0 0.0
    %296 = vmatprep.subr.mxu0 0.0
    %297 = vmatpush1.msra.mxu0 0.0
    %298 = vmatprep.subr.mxu0 0.0
    %299 = vmatpush1.msra.mxu0 0.0
    %300 = vmatprep.subr.mxu0 0.0
    %301 = vmatpush1.msra.mxu0 0.0
    %302 = vmatprep.subr.mxu0 0.0
    %303 = vmatpush1.msra.mxu0 0.0
    %304 = vmatprep.subr.mxu0 0.0
    %305 = vmatpush1.msra.mxu0 0.0
    %306 = vmatprep.subr.mxu0 0.0
    %307 = vmatpush1.msra.mxu0 0.0
    %308 = vmatprep.subr.mxu0 0.0
    %309 = vmatpush1.msra.mxu0 0.0
    %310 = vmatprep.mubr.f32.mxu0 0.0
    %311 = vmatmul.mubr.f32.gmra.mrb[0].mxu0 %v223
    %v312 = vpop.f32.mrb[0].mxu0
    %v313 = vadd.f32 %v245, %v312
    %v314 = vpop.f32.mrb[0].mxu0
    %315 = vdwg.mxu0
    %v316 = vmax.f32 %v313, 0.0
    %s317 = scalar_lea.vmem [#allocation5], 408
    %v318 = vld [vmem:[%s317] sm:$0xff]
    %v319 = vld [vmem:[%s317 + $0x8] sm:$0xff]
    %v320 = vld [vmem:[%s317 + $0x10] sm:$0xff]
    %v321 = vld [vmem:[%s317 + $0x18] sm:$0xff]
    %v322 = vld [vmem:[%s317 + $0x20] sm:$0xff]
    %v323 = vld [vmem:[%s317 + $0x28] sm:$0xff]
    %v324 = vld [vmem:[%s317 + $0x30] sm:$0xff]
    %v325 = vld [vmem:[%s317 + $0x38] sm:$0xff]
    %v326 = vld [vmem:[%s317 + $0x40] sm:$0xff]
    %v327 = vld [vmem:[%s317 + $0x48] sm:$0xff]
    %v328 = vld [vmem:[%s317 + $0x50] sm:$0xff]
    %v329 = vld [vmem:[%s317 + $0x58] sm:$0xff]
    %v330 = vld [vmem:[%s317 + $0x60] sm:$0xff]
    %v331 = vld [vmem:[%s317 + $0x68] sm:$0xff]
    %v332 = vld [vmem:[%s317 + $0x70] sm:$0xff]
    %v333 = vld [vmem:[%s317 + $0x78] sm:$0xff]
    %v334 = vld [vmem:[%s317 + $0x80] sm:$0x1]
    %v335 = vlaneseq
    %v336 = vshrl.u32 %v335, 7
    %v337 = vsub.s32 0, %v336
    %v338 = vrot.slane %v334, %v337
    %339 = vmatprep.subr.mxu0 0.0
    %340 = vmatpush1.msra.mxu0 %v318
    %341 = vmatprep.subr.mxu0 0.0
    %342 = vmatpush1.msra.mxu0 %v319
    %343 = vmatprep.subr.mxu0 0.0
    %344 = vmatpush1.msra.mxu0 %v320
    %345 = vmatprep.subr.mxu0 0.0
    %346 = vmatpush1.msra.mxu0 %v321
    %347 = vmatprep.subr.mxu0 0.0
    %348 = vmatpush1.msra.mxu0 %v322
    %349 = vmatprep.subr.mxu0 0.0
    %350 = vmatpush1.msra.mxu0 %v323
    %351 = vmatprep.subr.mxu0 0.0
    %352 = vmatpush1.msra.mxu0 %v324
    %353 = vmatprep.subr.mxu0 0.0
    %354 = vmatpush1.msra.mxu0 %v325
    %355 = vmatprep.subr.mxu0 0.0
    %356 = vmatpush1.msra.mxu0 %v326
    %357 = vmatprep.subr.mxu0 0.0
    %358 = vmatpush1.msra.mxu0 %v327
    %359 = vmatprep.subr.mxu0 0.0
    %360 = vmatpush1.msra.mxu0 %v328
    %361 = vmatprep.subr.mxu0 0.0
    %362 = vmatpush1.msra.mxu0 %v329
    %363 = vmatprep.subr.mxu0 0.0
    %364 = vmatpush1.msra.mxu0 %v330
    %365 = vmatprep.subr.mxu0 0.0
    %366 = vmatpush1.msra.mxu0 %v331
    %367 = vmatprep.subr.mxu0 0.0
    %368 = vmatpush1.msra.mxu0 %v332
    %369 = vmatprep.subr.mxu0 0.0
    %370 = vmatpush1.msra.mxu0 %v333
    %371 = vmatprep.subr.mxu0 0.0
    %372 = vmatpush1.msra.mxu0 0.0
    %373 = vmatprep.subr.mxu0 0.0
    %374 = vmatpush1.msra.mxu0 0.0
    %375 = vmatprep.subr.mxu0 0.0
    %376 = vmatpush1.msra.mxu0 0.0
    %377 = vmatprep.subr.mxu0 0.0
    %378 = vmatpush1.msra.mxu0 0.0
    %379 = vmatprep.subr.mxu0 0.0
    %380 = vmatpush1.msra.mxu0 0.0
    %381 = vmatprep.subr.mxu0 0.0
    %382 = vmatpush1.msra.mxu0 0.0
    %383 = vmatprep.subr.mxu0 0.0
    %384 = vmatpush1.msra.mxu0 0.0
    %385 = vmatprep.subr.mxu0 0.0
    %386 = vmatpush1.msra.mxu0 0.0
    %387 = vmatprep.subr.mxu0 0.0
    %388 = vmatpush1.msra.mxu0 0.0
    %389 = vmatprep.subr.mxu0 0.0
    %390 = vmatpush1.msra.mxu0 0.0
    %391 = vmatprep.subr.mxu0 0.0
    %392 = vmatpush1.msra.mxu0 0.0
    %393 = vmatprep.subr.mxu0 0.0
    %394 = vmatpush1.msra.mxu0 0.0
    %395 = vmatprep.subr.mxu0 0.0
    %396 = vmatpush1.msra.mxu0 0.0
    %397 = vmatprep.subr.mxu0 0.0
    %398 = vmatpush1.msra.mxu0 0.0
    %399 = vmatprep.subr.mxu0 0.0
    %400 = vmatpush1.msra.mxu0 0.0
    %401 = vmatprep.subr.mxu0 0.0
    %402 = vmatpush1.msra.mxu0 0.0
    %403 = vmatprep.mubr.f32.mxu0 0.0
    %404 = vmatmul.mubr.f32.gmra.mrb[0].mxu0 %v316
    %v405 = vpop.f32.mrb[0].mxu0
    %v406 = vadd.f32 %v338, %v405
    %v407 = vpop.f32.mrb[0].mxu0
    %408 = vdwg.mxu0
    %v409 = vlaneseq
    %v410 = vshrl.u32 %v409, 7
    %vm411 = vcmp.lt.s32.totalorder %v410, 2
    %v412 = vsel %vm411, %v406, -1e+30
    %v413 = vrot.slane %v412, 4
    %v414 = vmax.f32 %v412, %v413
    %v415 = vrot.slane %v414, 2
    %v416 = vmax.f32 %v414, %v415
    %v417 = vrot.slane %v416, 1
    %v418 = vmax.f32 %v416, %v417
    %v419 = vsub.f32 %v412, %v418
    %v420 = vmul.f32 %v419, 1.442695
    %v421 = vpow.pop %v420
    %v422 = vrot.slane %v421, 4
    %v423 = vadd.f32 %v421, %v422
    %v424 = vrot.slane %v423, 2
    %v425 = vadd.f32 %v423, %v424
    %v426 = vrot.slane %v425, 1
    %v427 = vadd.f32 %v425, %v426
    %v428 = vrcp.pop %v427
    %v429 = vmul.f32 %v421, %v428
    %430 = vst [vmem:[#allocation7] sm:$0xff] %v429
    // Predicated region
    $region18: #{tpu_custom_call.1} parent=1 // pred_check
      _
    $region19: #{tpu_custom_call.1} parent=1 // pred_check_branch
      %432 = sbr.rel (0) target = $region21
    $region20: #{tpu_custom_call.1} parent=1 // pred_region
      %s434 = ssub.s32 128, 128
      %435 = vsyncadd [#allocation4], %s434
      %s437 = sshll.u32 [#allocation7], 4
      %s438 = int_to_ptr.vmem [resolvable:$true] %s437
      %440 = dma.vmem_to_hbm [thread:$0]  %s438, 128, %s2, [#allocation4]
    $region21: #{tpu_custom_call.1} parent=1 // pred_fallthru
      _
    // Predicated region
    $region22: #{tpu_custom_call.1} parent=1 // pred_check
      _
    $region23: #{tpu_custom_call.1} parent=1 // pred_check_branch
      %442 = sbr.rel (0) target = $region25
    $region24: #{tpu_custom_call.1} parent=1 // pred_region
      %443 = dma.done [#allocation4], 128
    $region25: #{tpu_custom_call.1} parent=1 // pred_fallthru
      _
    %444 = vsyncpa [#allocation3], 1
    %445 = vsyncpa [#allocation6], 1
    %446 = vsyncpa [#allocation4], 1

</llo_original>
